<compile_context>
chip_gen: v7x
topology: tpu7x:2x2x1
jax: 0.10.0
libtpu: 0.0.40
codegen_flags: <defaults>
</compile_context>

<pallas_src>
import math

import jax
import jax.numpy as jnp
from jax.experimental import pallas as pl
from jax.experimental.pallas import tpu as pltpu


def _round_up(x, m):
    return ((x + m - 1) // m) * m


def _dqn_mlp_kernel(s0t_ref, s1t_ref, w1t_ref, b1_ref, w2t_ref, b2_ref,
                    w3t_ref, b3_ref, o_ref):
    # Feature-major layout (batch on lanes):
    #   s0t/s1t: (S, TB)   w1t: (60, 2S)  b1: (60, 1)
    #   w2t: (15, 60)      b2: (15, 1)
    #   w3t: (A, 15)       b3: (A, 1)     o: (A, TB)
    # Fused concat along sublanes -> one K=2S MXU matmul for layer 1 (no HBM x).
    x = jnp.concatenate([s0t_ref[...], s1t_ref[...]], axis=0)          # (2S, TB)

    h1 = jnp.dot(w1t_ref[...], x, preferred_element_type=jnp.float32)  # (60, TB)
    h1 = jnp.maximum(h1 + b1_ref[...], 0.0)

    h2 = jnp.dot(w2t_ref[...], h1, preferred_element_type=jnp.float32)  # (15, TB)
    h2 = jnp.maximum(h2 + b2_ref[...], 0.0)

    out = jnp.dot(w3t_ref[...], h2, preferred_element_type=jnp.float32) + b3_ref[...]
    o_ref[...] = out.astype(o_ref.dtype)                                 # lane-dense store


def dqn_forward(state_t, state_t_plus_1, params, *, block_b=4096):
    """Forward pass of DQNModel_v4.

    state_t, state_t_plus_1: (B, S) float32
    params: dict with w1 (2S,60), b1 (60,), w2 (60,15), b2 (15,), w3 (15,A), b3 (A,)
    returns: (B, A) float32
    """
    B, S = state_t.shape
    A = params["w3"].shape[1]

    # Wrapper-side layout plumbing: feature-major transposes (weights are tiny).
    s0t = state_t.T                      # (S, B)
    s1t = state_t_plus_1.T               # (S, B)
    w1t = params["w1"].T                 # (60, 2S)  single resident ref
    w2t = params["w2"].T                 # (15, 60)
    w3t = params["w3"].T                 # (A, 15)
    b1 = params["b1"].reshape(-1, 1)     # (60, 1)
    b2 = params["b2"].reshape(-1, 1)     # (15, 1)
    b3 = params["b3"].reshape(-1, 1)     # (A, 1)

    # Batch tile: lane-dense (multiple of 128 lanes); >=2 grid steps for large B so
    # v7x's two TensorCores both get work under dimension_semantics=("parallel",).
    n_steps = max(1, -(-B // block_b))
    if B >= 256:
        n_steps = max(n_steps, 2)
    tb = _round_up(-(-B // n_steps), 128)
    b_pad = _round_up(B, tb)
    if b_pad != B:
        pad = ((0, 0), (0, b_pad - B))
        s0t = jnp.pad(s0t, pad)
        s1t = jnp.pad(s1t, pad)
    grid = (b_pad // tb,)

    # Moving block: batch (lane) axis only. Constant index map -> weights/biases stay
    # VMEM-resident across all grid steps.
    batch_spec = lambda n: pl.BlockSpec((n, tb), lambda i: (0, i))
    resident = lambda arr: pl.BlockSpec(arr.shape, lambda i: (0, 0))

    flops = 2 * b_pad * (2 * S * 60 + 60 * 15 + 15 * A)
    bytes_accessed = 4 * (b_pad * 2 * S + b_pad * A
                          + w1t.size + w2t.size + w3t.size
                          + b1.size + b2.size + b3.size)

    out_t = pl.pallas_call(
        _dqn_mlp_kernel,
        out_shape=jax.ShapeDtypeStruct((A, b_pad), jnp.float32),
        grid=grid,
        in_specs=[
            batch_spec(S),            # state_t^T
            batch_spec(S),            # state_t_plus_1^T
            resident(w1t), resident(b1),
            resident(w2t), resident(b2),
            resident(w3t), resident(b3),
        ],
        out_specs=batch_spec(A),
        compiler_params=pltpu.CompilerParams(
            dimension_semantics=("parallel",)),
        cost_estimate=pl.CostEstimate(
            flops=flops, transcendentals=0, bytes_accessed=bytes_accessed),
    )(s0t, s1t, w1t, b1, w2t, b2, w3t, b3)

    return out_t[:, :B].T


def init_params(key, states_size, action_size):
    """Deterministic init mirroring nn.Linear's U(-1/sqrt(fan_in), 1/sqrt(fan_in))."""
    dims = [(states_size * 2, 60), (60, 15), (15, action_size)]
    params = {}
    for i, (fan_in, fan_out) in enumerate(dims, start=1):
        key, kw, kb = jax.random.split(key, 3)
        bound = 1.0 / math.sqrt(fan_in)
        params[f"w{i}"] = jax.random.uniform(
            kw, (fan_in, fan_out), jnp.float32, -bound, bound)
        params[f"b{i}"] = jax.random.uniform(
            kb, (fan_out,), jnp.float32, -bound, bound)
    return params


def _reference(state_t, state_t_plus_1, params):
    x = jnp.concatenate([state_t, state_t_plus_1], axis=1)
    h1 = jnp.maximum(x @ params["w1"] + params["b1"], 0.0)
    h2 = jnp.maximum(h1 @ params["w2"] + params["b2"], 0.0)
    return h2 @ params["w3"] + params["b3"]


if __name__ == "__main__":
    states_size = 8
    action_size = 4

    key = jax.random.PRNGKey(0)
    key, k1, k2, kp = jax.random.split(key, 4)
    params = init_params(kp, states_size, action_size)

    # Small primary case (single grid step, batch padded to one 128-lane tile).
    batch = 8
    state_t = jax.random.normal(k1, (batch, states_size), jnp.float32)
    state_t1 = jax.random.normal(k2, (batch, states_size), jnp.float32)

    out = jax.block_until_ready(dqn_forward(state_t, state_t1, params))
    ref = _reference(state_t, state_t1, params)
    assert out.shape == (batch, action_size)
    assert jnp.allclose(out, ref, atol=1e-5, rtol=1e-5)

    # Ragged batch (exercises lane padding + multi-step parallel grid).
    key, k3, k4 = jax.random.split(key, 3)
    batch2 = 300
    s2 = jax.random.normal(k3, (batch2, states_size), jnp.float32)
    s2p = jax.random.normal(k4, (batch2, states_size), jnp.float32)
    out2 = jax.block_until_ready(dqn_forward(s2, s2p, params, block_b=128))
    ref2 = _reference(s2, s2p, params)
    assert out2.shape == (batch2, action_size)
    assert jnp.allclose(out2, ref2, atol=1e-5, rtol=1e-5)

    print("KERNEL_OK")
</pallas_src>

<mosaic_0001>
module attributes {stable_mosaic.version = 11 : i64} {
  func.func @_dqn_mlp_kernel(%arg0: i32, %arg1: memref<8x128xf32, #tpu.memory_space<vmem>>, %arg2: memref<8x128xf32, #tpu.memory_space<vmem>>, %arg3: memref<60x16xf32, #tpu.memory_space<vmem>>, %arg4: memref<60x1xf32, #tpu.memory_space<vmem>>, %arg5: memref<15x60xf32, #tpu.memory_space<vmem>>, %arg6: memref<15x1xf32, #tpu.memory_space<vmem>>, %arg7: memref<4x15xf32, #tpu.memory_space<vmem>>, %arg8: memref<4x1xf32, #tpu.memory_space<vmem>>, %arg9: memref<4x128xf32, #tpu.memory_space<vmem>>) attributes {dimension_semantics = [#tpu.dimension_semantics<parallel>], iteration_bounds = array<i64: 1>, scalar_prefetch = 0 : i64, scratch_operands = 0 : i64, tpu.core_type = #tpu.core_type<tc>, window_params = [{transform_indices = @transform_0, window_bounds = array<i64: 8, 128>}, {transform_indices = @transform_1, window_bounds = array<i64: 8, 128>}, {pipeline_mode = #tpu.pipeline_mode<synchronous>, transform_indices = @transform_2, window_bounds = array<i64: 60, 16>}, {pipeline_mode = #tpu.pipeline_mode<synchronous>, transform_indices = @transform_3, window_bounds = array<i64: 60, 1>}, {pipeline_mode = #tpu.pipeline_mode<synchronous>, transform_indices = @transform_4, window_bounds = array<i64: 15, 60>}, {pipeline_mode = #tpu.pipeline_mode<synchronous>, transform_indices = @transform_5, window_bounds = array<i64: 15, 1>}, {pipeline_mode = #tpu.pipeline_mode<synchronous>, transform_indices = @transform_6, window_bounds = array<i64: 4, 15>}, {pipeline_mode = #tpu.pipeline_mode<synchronous>, transform_indices = @transform_7, window_bounds = array<i64: 4, 1>}, {transform_indices = @transform_8, window_bounds = array<i64: 4, 128>}]} {
    %c0 = arith.constant 0 : index
    %c0_0 = arith.constant 0 : index
    %0 = vector.load %arg1[%c0, %c0_0] : memref<8x128xf32, #tpu.memory_space<vmem>>, vector<8x128xf32>
    %c0_1 = arith.constant 0 : index
    %c0_2 = arith.constant 0 : index
    %1 = vector.load %arg2[%c0_1, %c0_2] : memref<8x128xf32, #tpu.memory_space<vmem>>, vector<8x128xf32>
    %2 = tpu.concatenate %0, %1 in 0 : vector<8x128xf32>, vector<8x128xf32> -> vector<16x128xf32>
    %c0_3 = arith.constant 0 : index
    %c0_4 = arith.constant 0 : index
    %3 = vector.load %arg3[%c0_3, %c0_4] : memref<60x16xf32, #tpu.memory_space<vmem>>, vector<60x16xf32>
    %cst = arith.constant dense<0.000000e+00> : vector<60x128xf32>
    %4 = tpu.matmul %3, %2, %cst {dimension_numbers = #tpu.dot_dimension_numbers<[1], [0], [0], [1], [0, 0, 1, 1], [], []>} : vector<60x16xf32>, vector<16x128xf32>, vector<60x128xf32> -> vector<60x128xf32>
    %c0_5 = arith.constant 0 : index
    %c0_6 = arith.constant 0 : index
    %5 = vector.load %arg4[%c0_5, %c0_6] : memref<60x1xf32, #tpu.memory_space<vmem>>, vector<60x1xf32>
    %6 = vector.broadcast %5 : vector<60x1xf32> to vector<60x128xf32>
    %7 = arith.addf %4, %6 : vector<60x128xf32>
    %cst_7 = arith.constant 0.000000e+00 : f32
    %8 = vector.broadcast %cst_7 : f32 to vector<60x128xf32>
    %9 = arith.maximumf %7, %8 : vector<60x128xf32>
    %c0_8 = arith.constant 0 : index
    %c0_9 = arith.constant 0 : index
    %10 = vector.load %arg5[%c0_8, %c0_9] : memref<15x60xf32, #tpu.memory_space<vmem>>, vector<15x60xf32>
    %cst_10 = arith.constant dense<0.000000e+00> : vector<15x128xf32>
    %11 = tpu.matmul %10, %9, %cst_10 {dimension_numbers = #tpu.dot_dimension_numbers<[1], [0], [0], [1], [0, 0, 1, 1], [], []>} : vector<15x60xf32>, vector<60x128xf32>, vector<15x128xf32> -> vector<15x128xf32>
    %c0_11 = arith.constant 0 : index
    %c0_12 = arith.constant 0 : index
    %12 = vector.load %arg6[%c0_11, %c0_12] : memref<15x1xf32, #tpu.memory_space<vmem>>, vector<15x1xf32>
    %13 = vector.broadcast %12 : vector<15x1xf32> to vector<15x128xf32>
    %14 = arith.addf %11, %13 : vector<15x128xf32>
    %cst_13 = arith.constant 0.000000e+00 : f32
    %15 = vector.broadcast %cst_13 : f32 to vector<15x128xf32>
    %16 = arith.maximumf %14, %15 : vector<15x128xf32>
    %c0_14 = arith.constant 0 : index
    %c0_15 = arith.constant 0 : index
    %17 = vector.load %arg7[%c0_14, %c0_15] : memref<4x15xf32, #tpu.memory_space<vmem>>, vector<4x15xf32>
    %cst_16 = arith.constant dense<0.000000e+00> : vector<4x128xf32>
    %18 = tpu.matmul %17, %16, %cst_16 {dimension_numbers = #tpu.dot_dimension_numbers<[1], [0], [0], [1], [0, 0, 1, 1], [], []>} : vector<4x15xf32>, vector<15x128xf32>, vector<4x128xf32> -> vector<4x128xf32>
    %c0_17 = arith.constant 0 : index
    %c0_18 = arith.constant 0 : index
    %19 = vector.load %arg8[%c0_17, %c0_18] : memref<4x1xf32, #tpu.memory_space<vmem>>, vector<4x1xf32>
    %20 = vector.broadcast %19 : vector<4x1xf32> to vector<4x128xf32>
    %21 = arith.addf %18, %20 : vector<4x128xf32>
    %c0_19 = arith.constant 0 : index
    %c0_20 = arith.constant 0 : index
    %22 = vector.load %arg9[%c0_19, %c0_20] : memref<4x128xf32, #tpu.memory_space<vmem>>, vector<4x128xf32>
    tpu.vector_store %arg9[%c0_19, %c0_20], %21 {strides = array<i32>} : memref<4x128xf32, #tpu.memory_space<vmem>>, vector<4x128xf32>,
    return
  }
  func.func @transform_0(%arg0: i32) -> (i32, i32) {
    %c0_i32 = arith.constant 0 : i32
    %c0_i32_0 = arith.constant 0 : i32
    return %c0_i32, %arg0 : i32, i32
  }
  func.func @transform_1(%arg0: i32) -> (i32, i32) {
    %c0_i32 = arith.constant 0 : i32
    %c0_i32_0 = arith.constant 0 : i32
    return %c0_i32, %arg0 : i32, i32
  }
  func.func @transform_2(%arg0: i32) -> (i32, i32) {
    %c0_i32 = arith.constant 0 : i32
    %c0_i32_0 = arith.constant 0 : i32
    %c0_i32_1 = arith.constant 0 : i32
    return %c0_i32, %c0_i32_0 : i32, i32
  }
  func.func @transform_3(%arg0: i32) -> (i32, i32) {
    %c0_i32 = arith.constant 0 : i32
    %c0_i32_0 = arith.constant 0 : i32
    %c0_i32_1 = arith.constant 0 : i32
    return %c0_i32, %c0_i32_0 : i32, i32
  }
  func.func @transform_4(%arg0: i32) -> (i32, i32) {
    %c0_i32 = arith.constant 0 : i32
    %c0_i32_0 = arith.constant 0 : i32
    %c0_i32_1 = arith.constant 0 : i32
    return %c0_i32, %c0_i32_0 : i32, i32
  }
  func.func @transform_5(%arg0: i32) -> (i32, i32) {
    %c0_i32 = arith.constant 0 : i32
    %c0_i32_0 = arith.constant 0 : i32
    %c0_i32_1 = arith.constant 0 : i32
    return %c0_i32, %c0_i32_0 : i32, i32
  }
  func.func @transform_6(%arg0: i32) -> (i32, i32) {
    %c0_i32 = arith.constant 0 : i32
    %c0_i32_0 = arith.constant 0 : i32
    %c0_i32_1 = arith.constant 0 : i32
    return %c0_i32, %c0_i32_0 : i32, i32
  }
  func.func @transform_7(%arg0: i32) -> (i32, i32) {
    %c0_i32 = arith.constant 0 : i32
    %c0_i32_0 = arith.constant 0 : i32
    %c0_i32_1 = arith.constant 0 : i32
    return %c0_i32, %c0_i32_0 : i32, i32
  }
  func.func @transform_8(%arg0: i32) -> (i32, i32) {
    %c0_i32 = arith.constant 0 : i32
    %c0_i32_0 = arith.constant 0 : i32
    return %c0_i32, %arg0 : i32, i32
  }
}

</mosaic_0001>

<llo_original>
// kernel: tpu_custom_call.1
$region0: #{tpu_custom_call.1}
  #allocation0 [shape = 'u32[]', space=smem, size = 0x4, offset = 0x4, fixed_abs, tag = 'smem constant byte address 0x4 - core index']
  #allocation1 [shape = 'u32[144,128]{1,0:T(1,128)}', space=vmem, size = 0x12000, scoped, tag = 'internal scratch']
  %s0 = inlined_call_operand.vmem [shape: f32[8,128], index: 0, kind: input, shape index: {}]
  %s1 = inlined_call_operand.vmem [shape: f32[8,128], index: 1, kind: input, shape index: {}]
  %s2 = inlined_call_operand.vmem [shape: f32[60,16], index: 2, kind: input, shape index: {}]
  %s3 = inlined_call_operand.vmem [shape: f32[60,1], index: 3, kind: input, shape index: {}]
  %s4 = inlined_call_operand.vmem [shape: f32[15,60], index: 4, kind: input, shape index: {}]
  %s5 = inlined_call_operand.vmem [shape: f32[15,1], index: 5, kind: input, shape index: {}]
  %s6 = inlined_call_operand.vmem [shape: f32[4,15], index: 6, kind: input, shape index: {}]
  %s7 = inlined_call_operand.vmem [shape: f32[4,1], index: 7, kind: input, shape index: {}]
  %s8 = inlined_call_operand.hbm [shape: f32[4,128], index: 8, kind: output, shape index: {}]
  %s9 = sld [smem:[#allocation0]]
  $region42: #{tpu_custom_call.1} parent=0
    _
  %s11 = ssub.s32 1, %s9
  %s12 = scalar_select 0, %s11, %s9
  $region1: #{tpu_custom_call.1} parent=0
    #allocation2 [shape = 'u8[2048]{0}', space=vmem, size = 0x800, scoped, tag = 'output window, operand 0, single buffered']
    #allocation3 [shape = 's32[1]{0}', space=sflag, size = 0x4, scoped, tag = 'scoped memory for tpu_custom_call.1']
    %13 = vsyncpa [#allocation3], 0
    // Predicated region
    $region2: #{tpu_custom_call.1} parent=1 // pred_check
      _
    $region3: #{tpu_custom_call.1} parent=1 // pred_check_branch
      %15 = sbr.rel (0) target = $region5
    $region4: #{tpu_custom_call.1} parent=1 // pred_region
      _
    $region5: #{tpu_custom_call.1} parent=1 // pred_fallthru
      _
    // Predicated region
    $region6: #{tpu_custom_call.1} parent=1 // pred_check
      _
    $region7: #{tpu_custom_call.1} parent=1 // pred_check_branch
      %17 = sbr.rel (0) target = $region9
    $region8: #{tpu_custom_call.1} parent=1 // pred_region
      _
    $region9: #{tpu_custom_call.1} parent=1 // pred_fallthru
      _
    // Predicated region
    $region10: #{tpu_custom_call.1} parent=1 // pred_check
      _
    $region11: #{tpu_custom_call.1} parent=1 // pred_check_branch
      %19 = sbr.rel (0) target = $region13
    $region12: #{tpu_custom_call.1} parent=1 // pred_region
      _
    $region13: #{tpu_custom_call.1} parent=1 // pred_fallthru
      _
    // Predicated region
    $region14: #{tpu_custom_call.1} parent=1 // pred_check
      _
    $region15: #{tpu_custom_call.1} parent=1 // pred_check_branch
      %21 = sbr.rel (0) target = $region17
    $region16: #{tpu_custom_call.1} parent=1 // pred_region
      _
    $region17: #{tpu_custom_call.1} parent=1 // pred_fallthru
      _
    // Predicated region
    $region18: #{tpu_custom_call.1} parent=1 // pred_check
      _
    $region19: #{tpu_custom_call.1} parent=1 // pred_check_branch
      %23 = sbr.rel (0) target = $region21
    $region20: #{tpu_custom_call.1} parent=1 // pred_region
      _
    $region21: #{tpu_custom_call.1} parent=1 // pred_fallthru
      _
    // Predicated region
    $region22: #{tpu_custom_call.1} parent=1 // pred_check
      _
    $region23: #{tpu_custom_call.1} parent=1 // pred_check_branch
      %25 = sbr.rel (0) target = $region25
    $region24: #{tpu_custom_call.1} parent=1 // pred_region
      _
    $region25: #{tpu_custom_call.1} parent=1 // pred_fallthru
      _
    // Predicated region
    $region26: #{tpu_custom_call.1} parent=1 // pred_check
      _
    $region27: #{tpu_custom_call.1} parent=1 // pred_check_branch
      %27 = sbr.rel (0) target = $region29
    $region28: #{tpu_custom_call.1} parent=1 // pred_region
      _
    $region29: #{tpu_custom_call.1} parent=1 // pred_fallthru
      _
    // Predicated region
    $region30: #{tpu_custom_call.1} parent=1 // pred_check
      _
    $region31: #{tpu_custom_call.1} parent=1 // pred_check_branch
      %29 = sbr.rel (0) target = $region33
    $region32: #{tpu_custom_call.1} parent=1 // pred_region
      _
    $region33: #{tpu_custom_call.1} parent=1 // pred_fallthru
      _
    %v30 = vld [vmem:[%s0] sm:$0xff]
    %v31 = vld [vmem:[%s1] sm:$0xff]
    %v32 = vld [vmem:[%s2] sm:$0xff]
    %v33 = vld [vmem:[%s2 + $0x8] sm:$0xff]
    %v34 = vld [vmem:[%s2 + $0x10] sm:$0xff]
    %v35 = vld [vmem:[%s2 + $0x18] sm:$0xff]
    %v36 = vld [vmem:[%s2 + $0x20] sm:$0xff]
    %v37 = vld [vmem:[%s2 + $0x28] sm:$0xff]
    %v38 = vld [vmem:[%s2 + $0x30] sm:$0xff]
    %v39 = vld [vmem:[%s2 + $0x38] sm:$0xf]
    %v40 = vld [vmem:[%s3] sm:$0xff]
    %v41 = vld [vmem:[%s3 + $0x8] sm:$0xff]
    %v42 = vld [vmem:[%s3 + $0x10] sm:$0xff]
    %v43 = vld [vmem:[%s3 + $0x18] sm:$0xff]
    %v44 = vld [vmem:[%s3 + $0x20] sm:$0xff]
    %v45 = vld [vmem:[%s3 + $0x28] sm:$0xff]
    %v46 = vld [vmem:[%s3 + $0x30] sm:$0xff]
    %v47 = vld [vmem:[%s3 + $0x38] sm:$0xf]
    %49 = vset.pattern.permute.xlu0 0
    %50 = vperm.xlu0 %49, %v40
    %v51 = vpop.permute.xlu0 %50
    %54 = vset.pattern.permute.xlu0 0
    %55 = vperm.xlu0 %54, %v41
    %v56 = vpop.permute.xlu0 %55
    %59 = vset.pattern.permute.xlu0 0
    %60 = vperm.xlu0 %59, %v42
    %v61 = vpop.permute.xlu0 %60
    %64 = vset.pattern.permute.xlu0 0
    %65 = vperm.xlu0 %64, %v43
    %v66 = vpop.permute.xlu0 %65
    %69 = vset.pattern.permute.xlu0 0
    %70 = vperm.xlu0 %69, %v44
    %v71 = vpop.permute.xlu0 %70
    %74 = vset.pattern.permute.xlu0 0
    %75 = vperm.xlu0 %74, %v45
    %v76 = vpop.permute.xlu0 %75
    %79 = vset.pattern.permute.xlu0 0
    %80 = vperm.xlu0 %79, %v46
    %v81 = vpop.permute.xlu0 %80
    %84 = vset.pattern.permute.xlu0 0
    %85 = vperm.xlu0 %84, %v47
    %v86 = vpop.permute.xlu0 %85
    %vm88 = vcmask 130048
    %v90 = vsel %vm88, %v32, 0
    %v93 = vsel %vm88, %v33, 0
    %v96 = vsel %vm88, %v34, 0
    %v99 = vsel %vm88, %v35, 0
    %v102 = vsel %vm88, %v36, 0
    %v105 = vsel %vm88, %v37, 0
    %v108 = vsel %vm88, %v38, 0
    %v111 = vsel %vm88, %v39, 0
    %113 = vmatprep.subr.mxu0 0.0
    %114 = vmatpush1.msra.mxu0 %v30
    %115 = vmatprep.subr.mxu0 0.0
    %116 = vmatpush1.msra.mxu0 %v31
    %117 = vmatprep.subr.mxu0 0.0
    %118 = vmatpush1.msra.mxu0 0.0
    %119 = vmatprep.subr.mxu0 0.0
    %120 = vmatpush1.msra.mxu0 0.0
    %121 = vmatprep.subr.mxu0 0.0
    %122 = vmatpush1.msra.mxu0 0.0
    %123 = vmatprep.subr.mxu0 0.0
    %124 = vmatpush1.msra.mxu0 0.0
    %125 = vmatprep.subr.mxu0 0.0
    %126 = vmatpush1.msra.mxu0 0.0
    %127 = vmatprep.subr.mxu0 0.0
    %128 = vmatpush1.msra.mxu0 0.0
    %129 = vmatprep.subr.mxu0 0.0
    %130 = vmatpush1.msra.mxu0 0.0
    %131 = vmatprep.subr.mxu0 0.0
    %132 = vmatpush1.msra.mxu0 0.0
    %133 = vmatprep.subr.mxu0 0.0
    %134 = vmatpush1.msra.mxu0 0.0
    %135 = vmatprep.subr.mxu0 0.0
    %136 = vmatpush1.msra.mxu0 0.0
    %137 = vmatprep.subr.mxu0 0.0
    %138 = vmatpush1.msra.mxu0 0.0
    %139 = vmatprep.subr.mxu0 0.0
    %140 = vmatpush1.msra.mxu0 0.0
    %141 = vmatprep.subr.mxu0 0.0
    %142 = vmatpush1.msra.mxu0 0.0
    %143 = vmatprep.subr.mxu0 0.0
    %144 = vmatpush1.msra.mxu0 0.0
    %145 = vmatprep.subr.mxu0 0.0
    %146 = vmatpush1.msra.mxu0 0.0
    %147 = vmatprep.subr.mxu0 0.0
    %148 = vmatpush1.msra.mxu0 0.0
    %149 = vmatprep.subr.mxu0 0.0
    %150 = vmatpush1.msra.mxu0 0.0
    %151 = vmatprep.subr.mxu0 0.0
    %152 = vmatpush1.msra.mxu0 0.0
    %153 = vmatprep.subr.mxu0 0.0
    %154 = vmatpush1.msra.mxu0 0.0
    %155 = vmatprep.subr.mxu0 0.0
    %156 = vmatpush1.msra.mxu0 0.0
    %157 = vmatprep.subr.mxu0 0.0
    %158 = vmatpush1.msra.mxu0 0.0
    %159 = vmatprep.subr.mxu0 0.0
    %160 = vmatpush1.msra.mxu0 0.0
    %161 = vmatprep.subr.mxu0 0.0
    %162 = vmatpush1.msra.mxu0 0.0
    %163 = vmatprep.subr.mxu0 0.0
    %164 = vmatpush1.msra.mxu0 0.0
    %165 = vmatprep.subr.mxu0 0.0
    %166 = vmatpush1.msra.mxu0 0.0
    %167 = vmatprep.subr.mxu0 0.0
    %168 = vmatpush1.msra.mxu0 0.0
    %169 = vmatprep.subr.mxu0 0.0
    %170 = vmatpush1.msra.mxu0 0.0
    %171 = vmatprep.subr.mxu0 0.0
    %172 = vmatpush1.msra.mxu0 0.0
    %173 = vmatprep.subr.mxu0 0.0
    %174 = vmatpush1.msra.mxu0 0.0
    %175 = vmatprep.subr.mxu0 0.0
    %176 = vmatpush1.msra.mxu0 0.0
    %177 = vmatprep.mubr.f32.mxu0 0.0
    %178 = vmatmul.mubr.f32.gmra.mrb[0].mxu0 %v90
    %v179 = vpop.f32.mrb[0].mxu0
    %v180 = vadd.f32 %v51, %v179
    %v181 = vpop.f32.mrb[0].mxu0
    %182 = vmatprep.mubr.f32.mxu0 0.0
    %183 = vmatmul.mubr.f32.gmra.mrb[0].mxu0 %v93
    %v184 = vpop.f32.mrb[0].mxu0
    %v185 = vadd.f32 %v56, %v184
    %v186 = vpop.f32.mrb[0].mxu0
    %187 = vmatprep.mubr.f32.mxu0 0.0
    %188 = vmatmul.mubr.f32.gmra.mrb[0].mxu0 %v96
    %v189 = vpop.f32.mrb[0].mxu0
    %v190 = vadd.f32 %v61, %v189
    %v191 = vpop.f32.mrb[0].mxu0
    %192 = vmatprep.mubr.f32.mxu0 0.0
    %193 = vmatmul.mubr.f32.gmra.mrb[0].mxu0 %v99
    %v194 = vpop.f32.mrb[0].mxu0
    %v195 = vadd.f32 %v66, %v194
    %v196 = vpop.f32.mrb[0].mxu0
    %197 = vmatprep.mubr.f32.mxu0 0.0
    %198 = vmatmul.mubr.f32.gmra.mrb[0].mxu0 %v102
    %v199 = vpop.f32.mrb[0].mxu0
    %v200 = vadd.f32 %v71, %v199
    %v201 = vpop.f32.mrb[0].mxu0
    %202 = vmatprep.mubr.f32.mxu0 0.0
    %203 = vmatmul.mubr.f32.gmra.mrb[0].mxu0 %v105
    %v204 = vpop.f32.mrb[0].mxu0
    %v205 = vadd.f32 %v76, %v204
    %v206 = vpop.f32.mrb[0].mxu0
    %207 = vmatprep.mubr.f32.mxu0 0.0
    %208 = vmatmul.mubr.f32.gmra.mrb[0].mxu0 %v108
    %v209 = vpop.f32.mrb[0].mxu0
    %v210 = vadd.f32 %v81, %v209
    %v211 = vpop.f32.mrb[0].mxu0
    %212 = vmatprep.mubr.f32.mxu0 0.0
    %213 = vmatmul.mubr.f32.gmra.mrb[0].mxu0 %v111
    %v214 = vpop.f32.mrb[0].mxu0
    %v215 = vadd.f32 %v86, %v214
    %v216 = vpop.f32.mrb[0].mxu0
    %217 = vdwg.mxu0
    %v218 = vmax.f32 %v180, 0.0
    %v219 = vmax.f32 %v185, 0.0
    %v220 = vmax.f32 %v190, 0.0
    %v221 = vmax.f32 %v195, 0.0
    %v222 = vmax.f32 %v200, 0.0
    %v223 = vmax.f32 %v205, 0.0
    %v224 = vmax.f32 %v210, 0.0
    %v225 = vmax.f32 %v215, 0.0
    %v226 = vld [vmem:[%s4] sm:$0xff]
    %v227 = vld [vmem:[%s4 + $0x8] sm:$0x7f]
    %v228 = vld [vmem:[%s5] sm:$0xff]
    %v229 = vld [vmem:[%s5 + $0x8] sm:$0x7f]
    %231 = vset.pattern.permute.xlu0 0
    %232 = vperm.xlu0 %231, %v228
    %v233 = vpop.permute.xlu0 %232
    %236 = vset.pattern.permute.xlu0 0
    %237 = vperm.xlu0 %236, %v229
    %v238 = vpop.permute.xlu0 %237
    %vm240 = vcmask 490496
    %v242 = vsel %vm240, %v226, 0
    %v245 = vsel %vm240, %v227, 0
    %vm247 = vcmask 1043456
    %v249 = vsel %vm247, %v225, 0
    %251 = vmatprep.subr.mxu0 0.0
    %252 = vmatpush1.msra.mxu0 %v218
    %253 = vmatprep.subr.mxu0 0.0
    %254 = vmatpush1.msra.mxu0 %v219
    %255 = vmatprep.subr.mxu0 0.0
    %256 = vmatpush1.msra.mxu0 %v220
    %257 = vmatprep.subr.mxu0 0.0
    %258 = vmatpush1.msra.mxu0 %v221
    %259 = vmatprep.subr.mxu0 0.0
    %260 = vmatpush1.msra.mxu0 %v222
    %261 = vmatprep.subr.mxu0 0.0
    %262 = vmatpush1.msra.mxu0 %v223
    %263 = vmatprep.subr.mxu0 0.0
    %264 = vmatpush1.msra.mxu0 %v224
    %265 = vmatprep.subr.mxu0 0.0
    %266 = vmatpush1.msra.mxu0 %v249
    %267 = vmatprep.subr.mxu0 0.0
    %268 = vmatpush1.msra.mxu0 0.0
    %269 = vmatprep.subr.mxu0 0.0
    %270 = vmatpush1.msra.mxu0 0.0
    %271 = vmatprep.subr.mxu0 0.0
    %272 = vmatpush1.msra.mxu0 0.0
    %273 = vmatprep.subr.mxu0 0.0
    %274 = vmatpush1.msra.mxu0 0.0
    %275 = vmatprep.subr.mxu0 0.0
    %276 = vmatpush1.msra.mxu0 0.0
    %277 = vmatprep.subr.mxu0 0.0
    %278 = vmatpush1.msra.mxu0 0.0
    %279 = vmatprep.subr.mxu0 0.0
    %280 = vmatpush1.msra.mxu0 0.0
    %281 = vmatprep.subr.mxu0 0.0
    %282 = vmatpush1.msra.mxu0 0.0
    %283 = vmatprep.subr.mxu0 0.0
    %284 = vmatpush1.msra.mxu0 0.0
    %285 = vmatprep.subr.mxu0 0.0
    %286 = vmatpush1.msra.mxu0 0.0
    %287 = vmatprep.subr.mxu0 0.0
    %288 = vmatpush1.msra.mxu0 0.0
    %289 = vmatprep.subr.mxu0 0.0
    %290 = vmatpush1.msra.mxu0 0.0
    %291 = vmatprep.subr.mxu0 0.0
    %292 = vmatpush1.msra.mxu0 0.0
    %293 = vmatprep.subr.mxu0 0.0
    %294 = vmatpush1.msra.mxu0 0.0
    %295 = vmatprep.subr.mxu0 0.0
    %296 = vmatpush1.msra.mxu0 0.0
    %297 = vmatprep.subr.mxu0 0.0
    %298 = vmatpush1.msra.mxu0 0.0
    %299 = vmatprep.subr.mxu0 0.0
    %300 = vmatpush1.msra.mxu0 0.0
    %301 = vmatprep.subr.mxu0 0.0
    %302 = vmatpush1.msra.mxu0 0.0
    %303 = vmatprep.subr.mxu0 0.0
    %304 = vmatpush1.msra.mxu0 0.0
    %305 = vmatprep.subr.mxu0 0.0
    %306 = vmatpush1.msra.mxu0 0.0
    %307 = vmatprep.subr.mxu0 0.0
    %308 = vmatpush1.msra.mxu0 0.0
    %309 = vmatprep.subr.mxu0 0.0
    %310 = vmatpush1.msra.mxu0 0.0
    %311 = vmatprep.subr.mxu0 0.0
    %312 = vmatpush1.msra.mxu0 0.0
    %313 = vmatprep.subr.mxu0 0.0
    %314 = vmatpush1.msra.mxu0 0.0
    %315 = vmatprep.mubr.f32.mxu0 0.0
    %316 = vmatmul.mubr.f32.gmra.mrb[0].mxu0 %v242
    %v317 = vpop.f32.mrb[0].mxu0
    %v318 = vadd.f32 %v233, %v317
    %v319 = vpop.f32.mrb[0].mxu0
    %320 = vmatprep.mubr.f32.mxu0 0.0
    %321 = vmatmul.mubr.f32.gmra.mrb[0].mxu0 %v245
    %v322 = vpop.f32.mrb[0].mxu0
    %v323 = vadd.f32 %v238, %v322
    %v324 = vpop.f32.mrb[0].mxu0
    %325 = vdwg.mxu0
    %v326 = vmax.f32 %v318, 0.0
    %v327 = vmax.f32 %v323, 0.0
    %v328 = vld [vmem:[%s6] sm:$0xf]
    %v329 = vld [vmem:[%s7] sm:$0xf]
    %331 = vset.pattern.permute.xlu0 0
    %332 = vperm.xlu0 %331, %v329
    %v333 = vpop.permute.xlu0 %332
    %vm335 = vcmask 121856
    %v337 = vsel %vm335, %v328, 0
    %vm339 = vcmask 1046528
    %v341 = vsel %vm339, %v327, 0
    %343 = vmatprep.subr.mxu0 0.0
    %344 = vmatpush1.msra.mxu0 %v326
    %345 = vmatprep.subr.mxu0 0.0
    %346 = vmatpush1.msra.mxu0 %v341
    %347 = vmatprep.subr.mxu0 0.0
    %348 = vmatpush1.msra.mxu0 0.0
    %349 = vmatprep.subr.mxu0 0.0
    %350 = vmatpush1.msra.mxu0 0.0
    %351 = vmatprep.subr.mxu0 0.0
    %352 = vmatpush1.msra.mxu0 0.0
    %353 = vmatprep.subr.mxu0 0.0
    %354 = vmatpush1.msra.mxu0 0.0
    %355 = vmatprep.subr.mxu0 0.0
    %356 = vmatpush1.msra.mxu0 0.0
    %357 = vmatprep.subr.mxu0 0.0
    %358 = vmatpush1.msra.mxu0 0.0
    %359 = vmatprep.subr.mxu0 0.0
    %360 = vmatpush1.msra.mxu0 0.0
    %361 = vmatprep.subr.mxu0 0.0
    %362 = vmatpush1.msra.mxu0 0.0
    %363 = vmatprep.subr.mxu0 0.0
    %364 = vmatpush1.msra.mxu0 0.0
    %365 = vmatprep.subr.mxu0 0.0
    %366 = vmatpush1.msra.mxu0 0.0
    %367 = vmatprep.subr.mxu0 0.0
    %368 = vmatpush1.msra.mxu0 0.0
    %369 = vmatprep.subr.mxu0 0.0
    %370 = vmatpush1.msra.mxu0 0.0
    %371 = vmatprep.subr.mxu0 0.0
    %372 = vmatpush1.msra.mxu0 0.0
    %373 = vmatprep.subr.mxu0 0.0
    %374 = vmatpush1.msra.mxu0 0.0
    %375 = vmatprep.subr.mxu0 0.0
    %376 = vmatpush1.msra.mxu0 0.0
    %377 = vmatprep.subr.mxu0 0.0
    %378 = vmatpush1.msra.mxu0 0.0
    %379 = vmatprep.subr.mxu0 0.0
    %380 = vmatpush1.msra.mxu0 0.0
    %381 = vmatprep.subr.mxu0 0.0
    %382 = vmatpush1.msra.mxu0 0.0
    %383 = vmatprep.subr.mxu0 0.0
    %384 = vmatpush1.msra.mxu0 0.0
    %385 = vmatprep.subr.mxu0 0.0
    %386 = vmatpush1.msra.mxu0 0.0
    %387 = vmatprep.subr.mxu0 0.0
    %388 = vmatpush1.msra.mxu0 0.0
    %389 = vmatprep.subr.mxu0 0.0
    %390 = vmatpush1.msra.mxu0 0.0
    %391 = vmatprep.subr.mxu0 0.0
    %392 = vmatpush1.msra.mxu0 0.0
    %393 = vmatprep.subr.mxu0 0.0
    %394 = vmatpush1.msra.mxu0 0.0
    %395 = vmatprep.subr.mxu0 0.0
    %396 = vmatpush1.msra.mxu0 0.0
    %397 = vmatprep.subr.mxu0 0.0
    %398 = vmatpush1.msra.mxu0 0.0
    %399 = vmatprep.subr.mxu0 0.0
    %400 = vmatpush1.msra.mxu0 0.0
    %401 = vmatprep.subr.mxu0 0.0
    %402 = vmatpush1.msra.mxu0 0.0
    %403 = vmatprep.subr.mxu0 0.0
    %404 = vmatpush1.msra.mxu0 0.0
    %405 = vmatprep.subr.mxu0 0.0
    %406 = vmatpush1.msra.mxu0 0.0
    %407 = vmatprep.mubr.f32.mxu0 0.0
    %408 = vmatmul.mubr.f32.gmra.mrb[0].mxu0 %v337
    %v409 = vpop.f32.mrb[0].mxu0
    %v410 = vadd.f32 %v333, %v409
    %v411 = vpop.f32.mrb[0].mxu0
    %412 = vdwg.mxu0
    %413 = vst [vmem:[#allocation2] sm:$0xf] %v410
    // Predicated region
    $region34: #{tpu_custom_call.1} parent=1 // pred_check
      _
    $region35: #{tpu_custom_call.1} parent=1 // pred_check_branch
      %415 = sbr.rel (0) target = $region37
    $region36: #{tpu_custom_call.1} parent=1 // pred_region
      %s417 = ssub.s32 64, 64
      %418 = vsyncadd [#allocation3], %s417
      %s420 = sshll.u32 [#allocation2], 4
      %s421 = int_to_ptr.vmem [resolvable:$true] %s420
      %423 = dma.vmem_to_hbm [thread:$0]  %s421, 64, %s8, [#allocation3]
    $region37: #{tpu_custom_call.1} parent=1 // pred_fallthru
      _
    // Predicated region
    $region38: #{tpu_custom_call.1} parent=1 // pred_check
      _
    $region39: #{tpu_custom_call.1} parent=1 // pred_check_branch
      %425 = sbr.rel (0) target = $region41
    $region40: #{tpu_custom_call.1} parent=1 // pred_region
      %426 = dma.done [#allocation3], 64
    $region41: #{tpu_custom_call.1} parent=1 // pred_fallthru
      _
    %427 = vsyncpa [#allocation3], 1

</llo_original>
